<compile_context>
chip_gen: v5e
topology: v5e:2x2
jax: 0.10.0
libtpu: 0.0.40
codegen_flags: <defaults>
</compile_context>

<pallas_src>
import functools

import jax
import jax.numpy as jnp
from jax.experimental import pallas as pl
from jax.experimental.pallas import tpu as pltpu

_LANES = 128
_SUBLANES = 8


def _pearson_kernel(x_ref, y_ref, o_ref,
                    sx_ref, sy_ref, sxy_ref, sxx_ref, syy_ref,
                    *, n_valid: int):
    step = pl.program_id(0)

    @pl.when(step == 0)
    def _init():
        sx_ref[...] = jnp.zeros_like(sx_ref)
        sy_ref[...] = jnp.zeros_like(sy_ref)
        sxy_ref[...] = jnp.zeros_like(sxy_ref)
        sxx_ref[...] = jnp.zeros_like(sxx_ref)
        syy_ref[...] = jnp.zeros_like(syy_ref)

    x = x_ref[...].astype(jnp.float32)
    y = y_ref[...].astype(jnp.float32)
    tr = x.shape[0]
    # Fold the tile rows onto the 8 sublanes so the per-tile reduction stays as
    # vreg-wise VALU adds; the XLU scalar collapse happens only in finalize.
    xr = x.reshape(tr // _SUBLANES, _SUBLANES, _LANES)
    yr = y.reshape(tr // _SUBLANES, _SUBLANES, _LANES)

    sx_ref[...] += jnp.sum(xr, axis=0)
    sy_ref[...] += jnp.sum(yr, axis=0)
    sxy_ref[...] += jnp.sum(xr * yr, axis=0)
    sxx_ref[...] += jnp.sum(xr * xr, axis=0)
    syy_ref[...] += jnp.sum(yr * yr, axis=0)

    @pl.when(step == pl.num_programs(0) - 1)
    def _finalize():
        n = jnp.float32(n_valid)
        sx = jnp.sum(sx_ref[...])
        sy = jnp.sum(sy_ref[...])
        sxy = jnp.sum(sxy_ref[...])
        sxx = jnp.sum(sxx_ref[...])
        syy = jnp.sum(syy_ref[...])
        mx = sx / n
        my = sy / n
        # Raw-moment (single-pass) Pearson; zero padding contributes nothing.
        numerator = sxy - n * mx * my
        denominator = jnp.sqrt((sxx - n * mx * mx) * (syy - n * my * my))
        o_ref[0] = 1.0 - numerator / denominator


def pearson_loss(x: jax.Array, y: jax.Array, *, tile_rows: int = 1024) -> jax.Array:
    """1 - Pearson correlation over all elements of x and y (scalar f32)."""
    n = x.size
    assert y.size == n, "x and y must have the same number of elements"

    xf = x.reshape(-1)  # free for contiguous inputs; dtype kept native
    yf = y.reshape(-1)

    rows = -(-n // _LANES)                      # ceil(n / 128)
    rows = -(-rows // _SUBLANES) * _SUBLANES    # round up to sublane multiple
    if rows <= tile_rows:
        tr = rows                               # one tile covers everything
    else:
        tr = tile_rows                          # (1024,128) f32 tile fits all gens
        rows = -(-rows // tr) * tr              # whole number of tiles
    pad = rows * _LANES - n
    if pad:  # statically skipped for aligned sizes (e.g. the 2x4x16x16 test)
        # Zero padding contributes 0 to every raw moment -> no in-kernel mask.
        xf = jnp.pad(xf, (0, pad))
        yf = jnp.pad(yf, (0, pad))
    x2 = xf.reshape(rows, _LANES)
    y2 = yf.reshape(rows, _LANES)

    kernel = functools.partial(_pearson_kernel, n_valid=n)
    out = pl.pallas_call(
        kernel,
        out_shape=jax.ShapeDtypeStruct((1,), jnp.float32),
        grid_spec=pltpu.PrefetchScalarGridSpec(
            num_scalar_prefetch=0,
            grid=(rows // tr,),
            in_specs=[
                pl.BlockSpec((tr, _LANES), lambda i: (i, 0)),
                pl.BlockSpec((tr, _LANES), lambda i: (i, 0)),
            ],
            out_specs=pl.BlockSpec(memory_space=pltpu.MemorySpace.SMEM),
            scratch_shapes=[pltpu.VMEM((_SUBLANES, _LANES), jnp.float32)] * 5,
        ),
        compiler_params=pltpu.CompilerParams(
            dimension_semantics=("arbitrary",),  # reduction axis (accumulators)
        ),
    )(x2, y2)
    return out[0]


def _pearson_loss_ref(x, y):
    x = x.astype(jnp.float32)
    y = y.astype(jnp.float32)
    num = jnp.sum((x - x.mean()) * (y - y.mean()))
    den = jnp.sqrt(jnp.sum((x - x.mean()) ** 2) * jnp.sum((y - y.mean()) ** 2))
    return 1.0 - num / den


if __name__ == "__main__":
    key = jax.random.PRNGKey(0)
    kx, ky = jax.random.split(key)
    x = jax.random.normal(kx, (2, 4, 16, 16), dtype=jnp.float32)
    # Correlated-but-noisy y so the loss is non-trivial.
    y = 0.7 * x + 0.3 * jax.random.normal(ky, (2, 4, 16, 16), dtype=jnp.float32)

    loss = pearson_loss(x, y)
    jax.block_until_ready(loss)

    ref = _pearson_loss_ref(x, y)
    assert jnp.allclose(loss, ref, atol=1e-4, rtol=1e-4), (loss, ref)
    print("KERNEL_OK")
</pallas_src>

<mosaic_0001>
module attributes {stable_mosaic.version = 11 : i64} {
  func.func @_pearson_kernel(%arg0: i32, %arg1: memref<16x128xf32, #tpu.memory_space<vmem>>, %arg2: memref<16x128xf32, #tpu.memory_space<vmem>>, %arg3: memref<1xf32, #tpu.memory_space<smem>>, %arg4: memref<8x128xf32, #tpu.memory_space<vmem>>, %arg5: memref<8x128xf32, #tpu.memory_space<vmem>>, %arg6: memref<8x128xf32, #tpu.memory_space<vmem>>, %arg7: memref<8x128xf32, #tpu.memory_space<vmem>>, %arg8: memref<8x128xf32, #tpu.memory_space<vmem>>) attributes {dimension_semantics = [#tpu.dimension_semantics<arbitrary>], iteration_bounds = array<i64: 1>, scalar_prefetch = 0 : i64, scratch_operands = 5 : i64, tpu.core_type = #tpu.core_type<tc>, window_params = [{transform_indices = @transform_0, window_bounds = array<i64: 16, 128>}, {transform_indices = @transform_1, window_bounds = array<i64: 16, 128>}, {transform_indices = @transform_2, window_bounds = array<i64: 1>}]} {
    %c0_i32 = arith.constant 0 : i32
    %0 = arith.cmpi eq, %arg0, %c0_i32 : i32
    %1 = arith.extui %0 : i1 to i32
    %c0_i32_0 = arith.constant 0 : i32
    %2 = arith.cmpi ne, %1, %c0_i32_0 : i32
    scf.if %2 {
      %cst_30 = arith.constant 0.000000e+00 : f32
      %33 = vector.broadcast %cst_30 : f32 to vector<8x128xf32>
      %c0_31 = arith.constant 0 : index
      %c0_32 = arith.constant 0 : index
      %34 = vector.load %arg4[%c0_31, %c0_32] : memref<8x128xf32, #tpu.memory_space<vmem>>, vector<8x128xf32>
      tpu.vector_store %arg4[%c0_31, %c0_32], %33 {strides = array<i32>} : memref<8x128xf32, #tpu.memory_space<vmem>>, vector<8x128xf32>,
      %cst_33 = arith.constant 0.000000e+00 : f32
      %35 = vector.broadcast %cst_33 : f32 to vector<8x128xf32>
      %c0_34 = arith.constant 0 : index
      %c0_35 = arith.constant 0 : index
      %36 = vector.load %arg5[%c0_34, %c0_35] : memref<8x128xf32, #tpu.memory_space<vmem>>, vector<8x128xf32>
      tpu.vector_store %arg5[%c0_34, %c0_35], %35 {strides = array<i32>} : memref<8x128xf32, #tpu.memory_space<vmem>>, vector<8x128xf32>,
      %cst_36 = arith.constant 0.000000e+00 : f32
      %37 = vector.broadcast %cst_36 : f32 to vector<8x128xf32>
      %c0_37 = arith.constant 0 : index
      %c0_38 = arith.constant 0 : index
      %38 = vector.load %arg6[%c0_37, %c0_38] : memref<8x128xf32, #tpu.memory_space<vmem>>, vector<8x128xf32>
      tpu.vector_store %arg6[%c0_37, %c0_38], %37 {strides = array<i32>} : memref<8x128xf32, #tpu.memory_space<vmem>>, vector<8x128xf32>,
      %cst_39 = arith.constant 0.000000e+00 : f32
      %39 = vector.broadcast %cst_39 : f32 to vector<8x128xf32>
      %c0_40 = arith.constant 0 : index
      %c0_41 = arith.constant 0 : index
      %40 = vector.load %arg7[%c0_40, %c0_41] : memref<8x128xf32, #tpu.memory_space<vmem>>, vector<8x128xf32>
      tpu.vector_store %arg7[%c0_40, %c0_41], %39 {strides = array<i32>} : memref<8x128xf32, #tpu.memory_space<vmem>>, vector<8x128xf32>,
      %cst_42 = arith.constant 0.000000e+00 : f32
      %41 = vector.broadcast %cst_42 : f32 to vector<8x128xf32>
      %c0_43 = arith.constant 0 : index
      %c0_44 = arith.constant 0 : index
      %42 = vector.load %arg8[%c0_43, %c0_44] : memref<8x128xf32, #tpu.memory_space<vmem>>, vector<8x128xf32>
      tpu.vector_store %arg8[%c0_43, %c0_44], %41 {strides = array<i32>} : memref<8x128xf32, #tpu.memory_space<vmem>>, vector<8x128xf32>,
    } else {
    }
    %c0 = arith.constant 0 : index
    %c0_1 = arith.constant 0 : index
    %3 = vector.load %arg1[%c0, %c0_1] : memref<16x128xf32, #tpu.memory_space<vmem>>, vector<16x128xf32>
    %c0_2 = arith.constant 0 : index
    %c0_3 = arith.constant 0 : index
    %4 = vector.load %arg2[%c0_2, %c0_3] : memref<16x128xf32, #tpu.memory_space<vmem>>, vector<16x128xf32>
    %5 = vector.shape_cast %3 : vector<16x128xf32> to vector<2x8x128xf32>
    %6 = vector.shape_cast %4 : vector<16x128xf32> to vector<2x8x128xf32>
    %c0_4 = arith.constant 0 : index
    %c0_5 = arith.constant 0 : index
    %7 = vector.load %arg4[%c0_4, %c0_5] : memref<8x128xf32, #tpu.memory_space<vmem>>, vector<8x128xf32>
    %cst = arith.constant dense<0.000000e+00> : vector<8x128xf32>
    %8 = vector.multi_reduction <add>, %5, %cst [0] : vector<2x8x128xf32> to vector<8x128xf32>
    %9 = arith.addf %7, %8 : vector<8x128xf32>
    %c0_6 = arith.constant 0 : index
    %c0_7 = arith.constant 0 : index
    %10 = vector.load %arg4[%c0_6, %c0_7] : memref<8x128xf32, #tpu.memory_space<vmem>>, vector<8x128xf32>
    tpu.vector_store %arg4[%c0_6, %c0_7], %9 {strides = array<i32>} : memref<8x128xf32, #tpu.memory_space<vmem>>, vector<8x128xf32>,
    %c0_8 = arith.constant 0 : index
    %c0_9 = arith.constant 0 : index
    %11 = vector.load %arg5[%c0_8, %c0_9] : memref<8x128xf32, #tpu.memory_space<vmem>>, vector<8x128xf32>
    %cst_10 = arith.constant dense<0.000000e+00> : vector<8x128xf32>
    %12 = vector.multi_reduction <add>, %6, %cst_10 [0] : vector<2x8x128xf32> to vector<8x128xf32>
    %13 = arith.addf %11, %12 : vector<8x128xf32>
    %c0_11 = arith.constant 0 : index
    %c0_12 = arith.constant 0 : index
    %14 = vector.load %arg5[%c0_11, %c0_12] : memref<8x128xf32, #tpu.memory_space<vmem>>, vector<8x128xf32>
    tpu.vector_store %arg5[%c0_11, %c0_12], %13 {strides = array<i32>} : memref<8x128xf32, #tpu.memory_space<vmem>>, vector<8x128xf32>,
    %c0_13 = arith.constant 0 : index
    %c0_14 = arith.constant 0 : index
    %15 = vector.load %arg6[%c0_13, %c0_14] : memref<8x128xf32, #tpu.memory_space<vmem>>, vector<8x128xf32>
    %16 = arith.mulf %5, %6 : vector<2x8x128xf32>
    %cst_15 = arith.constant dense<0.000000e+00> : vector<8x128xf32>
    %17 = vector.multi_reduction <add>, %16, %cst_15 [0] : vector<2x8x128xf32> to vector<8x128xf32>
    %18 = arith.addf %15, %17 : vector<8x128xf32>
    %c0_16 = arith.constant 0 : index
    %c0_17 = arith.constant 0 : index
    %19 = vector.load %arg6[%c0_16, %c0_17] : memref<8x128xf32, #tpu.memory_space<vmem>>, vector<8x128xf32>
    tpu.vector_store %arg6[%c0_16, %c0_17], %18 {strides = array<i32>} : memref<8x128xf32, #tpu.memory_space<vmem>>, vector<8x128xf32>,
    %c0_18 = arith.constant 0 : index
    %c0_19 = arith.constant 0 : index
    %20 = vector.load %arg7[%c0_18, %c0_19] : memref<8x128xf32, #tpu.memory_space<vmem>>, vector<8x128xf32>
    %21 = arith.mulf %5, %5 : vector<2x8x128xf32>
    %cst_20 = arith.constant dense<0.000000e+00> : vector<8x128xf32>
    %22 = vector.multi_reduction <add>, %21, %cst_20 [0] : vector<2x8x128xf32> to vector<8x128xf32>
    %23 = arith.addf %20, %22 : vector<8x128xf32>
    %c0_21 = arith.constant 0 : index
    %c0_22 = arith.constant 0 : index
    %24 = vector.load %arg7[%c0_21, %c0_22] : memref<8x128xf32, #tpu.memory_space<vmem>>, vector<8x128xf32>
    tpu.vector_store %arg7[%c0_21, %c0_22], %23 {strides = array<i32>} : memref<8x128xf32, #tpu.memory_space<vmem>>, vector<8x128xf32>,
    %c0_23 = arith.constant 0 : index
    %c0_24 = arith.constant 0 : index
    %25 = vector.load %arg8[%c0_23, %c0_24] : memref<8x128xf32, #tpu.memory_space<vmem>>, vector<8x128xf32>
    %26 = arith.mulf %6, %6 : vector<2x8x128xf32>
    %cst_25 = arith.constant dense<0.000000e+00> : vector<8x128xf32>
    %27 = vector.multi_reduction <add>, %26, %cst_25 [0] : vector<2x8x128xf32> to vector<8x128xf32>
    %28 = arith.addf %25, %27 : vector<8x128xf32>
    %c0_26 = arith.constant 0 : index
    %c0_27 = arith.constant 0 : index
    %29 = vector.load %arg8[%c0_26, %c0_27] : memref<8x128xf32, #tpu.memory_space<vmem>>, vector<8x128xf32>
    tpu.vector_store %arg8[%c0_26, %c0_27], %28 {strides = array<i32>} : memref<8x128xf32, #tpu.memory_space<vmem>>, vector<8x128xf32>,
    %c0_i32_28 = arith.constant 0 : i32
    %30 = arith.cmpi eq, %arg0, %c0_i32_28 : i32
    %31 = arith.extui %30 : i1 to i32
    %c0_i32_29 = arith.constant 0 : i32
    %32 = arith.cmpi ne, %31, %c0_i32_29 : i32
    scf.if %32 {
      %c0_30 = arith.constant 0 : index
      %c0_31 = arith.constant 0 : index
      %33 = vector.load %arg4[%c0_30, %c0_31] : memref<8x128xf32, #tpu.memory_space<vmem>>, vector<8x128xf32>
      %34 = vector.shape_cast %33 : vector<8x128xf32> to vector<1x8x128xf32>
      %cst_32 = arith.constant dense<0.000000e+00> : vector<1xf32>
      %35 = vector.multi_reduction <add>, %34, %cst_32 [1, 2] : vector<1x8x128xf32> to vector<1xf32>
      %36 = vector.shape_cast %35 : vector<1xf32> to vector<1x1x1xf32>
      %37 = vector.extract %36[0, 0, 0] : f32 from vector<1x1x1xf32>
      %c0_33 = arith.constant 0 : index
      %c0_34 = arith.constant 0 : index
      %38 = vector.load %arg5[%c0_33, %c0_34] : memref<8x128xf32, #tpu.memory_space<vmem>>, vector<8x128xf32>
      %39 = vector.shape_cast %38 : vector<8x128xf32> to vector<1x8x128xf32>
      %cst_35 = arith.constant dense<0.000000e+00> : vector<1xf32>
      %40 = vector.multi_reduction <add>, %39, %cst_35 [1, 2] : vector<1x8x128xf32> to vector<1xf32>
      %41 = vector.shape_cast %40 : vector<1xf32> to vector<1x1x1xf32>
      %42 = vector.extract %41[0, 0, 0] : f32 from vector<1x1x1xf32>
      %c0_36 = arith.constant 0 : index
      %c0_37 = arith.constant 0 : index
      %43 = vector.load %arg6[%c0_36, %c0_37] : memref<8x128xf32, #tpu.memory_space<vmem>>, vector<8x128xf32>
      %44 = vector.shape_cast %43 : vector<8x128xf32> to vector<1x8x128xf32>
      %cst_38 = arith.constant dense<0.000000e+00> : vector<1xf32>
      %45 = vector.multi_reduction <add>, %44, %cst_38 [1, 2] : vector<1x8x128xf32> to vector<1xf32>
      %46 = vector.shape_cast %45 : vector<1xf32> to vector<1x1x1xf32>
      %47 = vector.extract %46[0, 0, 0] : f32 from vector<1x1x1xf32>
      %c0_39 = arith.constant 0 : index
      %c0_40 = arith.constant 0 : index
      %48 = vector.load %arg7[%c0_39, %c0_40] : memref<8x128xf32, #tpu.memory_space<vmem>>, vector<8x128xf32>
      %49 = vector.shape_cast %48 : vector<8x128xf32> to vector<1x8x128xf32>
      %cst_41 = arith.constant dense<0.000000e+00> : vector<1xf32>
      %50 = vector.multi_reduction <add>, %49, %cst_41 [1, 2] : vector<1x8x128xf32> to vector<1xf32>
      %51 = vector.shape_cast %50 : vector<1xf32> to vector<1x1x1xf32>
      %52 = vector.extract %51[0, 0, 0] : f32 from vector<1x1x1xf32>
      %c0_42 = arith.constant 0 : index
      %c0_43 = arith.constant 0 : index
      %53 = vector.load %arg8[%c0_42, %c0_43] : memref<8x128xf32, #tpu.memory_space<vmem>>, vector<8x128xf32>
      %54 = vector.shape_cast %53 : vector<8x128xf32> to vector<1x8x128xf32>
      %cst_44 = arith.constant dense<0.000000e+00> : vector<1xf32>
      %55 = vector.multi_reduction <add>, %54, %cst_44 [1, 2] : vector<1x8x128xf32> to vector<1xf32>
      %56 = vector.shape_cast %55 : vector<1xf32> to vector<1x1x1xf32>
      %57 = vector.extract %56[0, 0, 0] : f32 from vector<1x1x1xf32>
      %cst_45 = arith.constant 2.048000e+03 : f32
      %58 = arith.divf %37, %cst_45 : f32
      %cst_46 = arith.constant 2.048000e+03 : f32
      %59 = arith.divf %42, %cst_46 : f32
      %cst_47 = arith.constant 2.048000e+03 : f32
      %60 = arith.mulf %cst_47, %58 : f32
      %61 = arith.mulf %60, %59 : f32
      %62 = arith.subf %47, %61 : f32
      %cst_48 = arith.constant 2.048000e+03 : f32
      %63 = arith.mulf %cst_48, %58 : f32
      %64 = arith.mulf %63, %58 : f32
      %65 = arith.subf %52, %64 : f32
      %cst_49 = arith.constant 2.048000e+03 : f32
      %66 = arith.mulf %cst_49, %59 : f32
      %67 = arith.mulf %66, %59 : f32
      %68 = arith.subf %57, %67 : f32
      %69 = arith.mulf %65, %68 : f32
      %70 = math.sqrt %69 : f32
      %71 = arith.divf %62, %70 : f32
      %cst_50 = arith.constant 1.000000e+00 : f32
      %72 = arith.subf %cst_50, %71 : f32
      %c0_51 = arith.constant 0 : index
      %73 = memref.load %arg3[%c0_51] : memref<1xf32, #tpu.memory_space<smem>>
      memref.store %72, %arg3[%c0_51] : memref<1xf32, #tpu.memory_space<smem>>
    } else {
    }
    return
  }
  func.func @transform_0(%arg0: i32) -> (i32, i32) {
    %c0_i32 = arith.constant 0 : i32
    %c0_i32_0 = arith.constant 0 : i32
    return %arg0, %c0_i32 : i32, i32
  }
  func.func @transform_1(%arg0: i32) -> (i32, i32) {
    %c0_i32 = arith.constant 0 : i32
    %c0_i32_0 = arith.constant 0 : i32
    return %arg0, %c0_i32 : i32, i32
  }
  func.func @transform_2(%arg0: i32) -> i32 {
    %c0_i32 = arith.constant 0 : i32
    %c0_i32_0 = arith.constant 0 : i32
    return %c0_i32 : i32
  }
}

</mosaic_0001>

<llo_original>
// kernel: tpu_custom_call.1
$region0: #{tpu_custom_call.1}
  #allocation0 [shape = 'u32[]', space=smem, size = 0x4, offset = 0x4, fixed_abs, tag = 'smem constant byte address 0x4 - core index']
  #allocation1 [shape = 'u32[72,128]{1,0:T(1,128)}', space=vmem, size = 0x9000, scoped, tag = 'internal scratch']
  #allocation2 [shape = 'f32[8,128]{1,0:T(8,128)}', space=vmem, size = 0x1000, scoped, tag = 'scratch operand']
  #allocation3 [shape = 'f32[8,128]{1,0:T(8,128)}', space=vmem, size = 0x1000, scoped, tag = 'scratch operand']
  #allocation4 [shape = 'f32[8,128]{1,0:T(8,128)}', space=vmem, size = 0x1000, scoped, tag = 'scratch operand']
  #allocation5 [shape = 'f32[8,128]{1,0:T(8,128)}', space=vmem, size = 0x1000, scoped, tag = 'scratch operand']
  #allocation6 [shape = 'f32[8,128]{1,0:T(8,128)}', space=vmem, size = 0x1000, scoped, tag = 'scratch operand']
  %s0 = inlined_call_operand.hbm [shape: f32[16,128], index: 0, kind: input, shape index: {}]
  %s1 = inlined_call_operand.hbm [shape: f32[16,128], index: 1, kind: input, shape index: {}]
  %s2 = inlined_call_operand.hbm [shape: f32[1], index: 2, kind: output, shape index: {}]
  %s3 = sld [smem:[#allocation0]]
  $region34: #{tpu_custom_call.1} parent=0
    _
  %s5 = ssub.s32 1, %s3
  %s6 = scalar_select 0, %s5, %s3
  $region1: #{tpu_custom_call.1} parent=0
    #allocation7 [shape = 'u8[8192]{0}', space=vmem, size = 0x2000, scoped, tag = 'input window, operand 0, single buffered']
    #allocation8 [shape = 's32[1]{0}', space=sflag, size = 0x4, scoped, tag = 'scoped memory for tpu_custom_call.1']
    #allocation9 [shape = 's32[1]{0}', space=sflag, size = 0x4, scoped, tag = 'scoped memory for tpu_custom_call.1']
    #allocation10 [shape = 'u8[8192]{0}', space=vmem, size = 0x2000, scoped, tag = 'input window, operand 1, single buffered']
    #allocation11 [shape = 's32[1]{0}', space=sflag, size = 0x4, scoped, tag = 'scoped memory for tpu_custom_call.1']
    #allocation12 [shape = 'u8[512]{0}', space=smem, size = 0x200, scoped, tag = 'output window, operand 0, single buffered']
    %7 = vsyncpa [#allocation8], 0
    %8 = vsyncpa [#allocation11], 0
    %9 = vsyncpa [#allocation9], 0
    // Predicated region
    $region2: #{tpu_custom_call.1} parent=1 // pred_check
      _
    $region3: #{tpu_custom_call.1} parent=1 // pred_check_branch
      %11 = sbr.rel (0) target = $region5
    $region4: #{tpu_custom_call.1} parent=1 // pred_region
      %13 = vsyncadd [#allocation8], 0
      %s14 = sshll.u32 %s0, 4
      %s15 = int_to_ptr.hbm [resolvable:$true] %s14
      %s16 = sshll.u32 [#allocation7], 4
      %s17 = int_to_ptr.vmem [resolvable:$true] %s16
      %22 = dma.hbm_to_vmem [thread:$0]  %s15, 256, %s17, [#allocation8], 128, 128, 8
    $region5: #{tpu_custom_call.1} parent=1 // pred_fallthru
      _
    // Predicated region
    $region6: #{tpu_custom_call.1} parent=1 // pred_check
      _
    $region7: #{tpu_custom_call.1} parent=1 // pred_check_branch
      %24 = sbr.rel (0) target = $region9
    $region8: #{tpu_custom_call.1} parent=1 // pred_region
      %26 = vsyncadd [#allocation11], 0
      %s27 = sshll.u32 %s1, 4
      %s28 = int_to_ptr.hbm [resolvable:$true] %s27
      %s29 = sshll.u32 [#allocation10], 4
      %s30 = int_to_ptr.vmem [resolvable:$true] %s29
      %35 = dma.hbm_to_vmem [thread:$0]  %s28, 256, %s30, [#allocation11], 128, 128, 8
    $region9: #{tpu_custom_call.1} parent=1 // pred_fallthru
      _
    // Predicated region
    $region10: #{tpu_custom_call.1} parent=1 // pred_check
      _
    $region11: #{tpu_custom_call.1} parent=1 // pred_check_branch
      %37 = sbr.rel (0) target = $region13
    $region12: #{tpu_custom_call.1} parent=1 // pred_region
      %39 = dma.done [#allocation8], 256
    $region13: #{tpu_custom_call.1} parent=1 // pred_fallthru
      _
    // Predicated region
    $region14: #{tpu_custom_call.1} parent=1 // pred_check
      _
    $region15: #{tpu_custom_call.1} parent=1 // pred_check_branch
      %41 = sbr.rel (0) target = $region17
    $region16: #{tpu_custom_call.1} parent=1 // pred_region
      %43 = dma.done [#allocation11], 256
    $region17: #{tpu_custom_call.1} parent=1 // pred_fallthru
      _
    %p44 = scmp.eq.s32.totalorder 0, 0
    // Predicated region
    $region18: #{tpu_custom_call.1} parent=1 // pred_check
      %p45 = pneg %p44
    $region19: #{tpu_custom_call.1} parent=1 // pred_check_branch
      %47 = sbr.rel (%p45) target = $region21
    $region20: #{tpu_custom_call.1} parent=1 // pred_region
      %48 = vst [vmem:[#allocation2] sm:$0xff] 0.0
      %49 = vst [vmem:[#allocation3] sm:$0xff] 0.0
      %50 = vst [vmem:[#allocation4] sm:$0xff] 0.0
      %51 = vst [vmem:[#allocation5] sm:$0xff] 0.0
      %52 = vst [vmem:[#allocation6] sm:$0xff] 0.0
    $region21: #{tpu_custom_call.1} parent=1 // pred_fallthru
      _
    %v53 = vld [vmem:[#allocation7] sm:$0xff]
    %v54 = vld [vmem:[#allocation7 + $0x8] sm:$0xff]
    %v55 = vld [vmem:[#allocation10] sm:$0xff]
    %v56 = vld [vmem:[#allocation10 + $0x8] sm:$0xff]
    %v57 = vld [vmem:[#allocation2] sm:$0xff]
    %v58 = vadd.f32 %v53, %v54
    %v59 = vadd.f32 %v57, %v58
    %60 = vst [vmem:[#allocation2] sm:$0xff] %v59
    %v61 = vld [vmem:[#allocation3] sm:$0xff]
    %v62 = vadd.f32 %v55, %v56
    %v63 = vadd.f32 %v61, %v62
    %64 = vst [vmem:[#allocation3] sm:$0xff] %v63
    %v65 = vld [vmem:[#allocation4] sm:$0xff]
    %v66 = vmul.f32 %v53, %v55
    %v67 = vmul.f32 %v54, %v56
    %v68 = vadd.f32 %v66, %v67
    %v69 = vadd.f32 %v65, %v68
    %70 = vst [vmem:[#allocation4] sm:$0xff] %v69
    %v71 = vld [vmem:[#allocation5] sm:$0xff]
    %v72 = vmul.f32 %v53, %v53
    %v73 = vmul.f32 %v54, %v54
    %v74 = vadd.f32 %v72, %v73
    %v75 = vadd.f32 %v71, %v74
    %76 = vst [vmem:[#allocation5] sm:$0xff] %v75
    %v77 = vld [vmem:[#allocation6] sm:$0xff]
    %v78 = vmul.f32 %v55, %v55
    %v79 = vmul.f32 %v56, %v56
    %v80 = vadd.f32 %v78, %v79
    %v81 = vadd.f32 %v77, %v80
    %82 = vst [vmem:[#allocation6] sm:$0xff] %v81
    // Predicated region
    $region22: #{tpu_custom_call.1} parent=1 // pred_check
      %p83 = pneg %p44
    $region23: #{tpu_custom_call.1} parent=1 // pred_check_branch
      %85 = sbr.rel (%p83) target = $region25
    $region24: #{tpu_custom_call.1} parent=1 // pred_region
      %v86 = vld [vmem:[#allocation2] sm:$0xff]
      %87 = vadd.xlane.f32.xlu0 %v86
      %v88 = vpop.xlane.xlu0 %87
      %v89 = vrot.slane %v88, 4
      %v90 = vadd.f32 %v88, %v89
      %v91 = vrot.slane %v90, 2
      %v92 = vadd.f32 %v90, %v91
      %v93 = vrot.slane %v92, 1
      %v94 = vadd.f32 %v92, %v93
      %s95 = vtos %v94
      %v96 = vld [vmem:[#allocation3] sm:$0xff]
      %97 = vadd.xlane.f32.xlu0 %v96
      %v98 = vpop.xlane.xlu0 %97
      %v99 = vrot.slane %v98, 4
      %v100 = vadd.f32 %v98, %v99
      %v101 = vrot.slane %v100, 2
      %v102 = vadd.f32 %v100, %v101
      %v103 = vrot.slane %v102, 1
      %v104 = vadd.f32 %v102, %v103
      %s105 = vtos %v104
      %v106 = vld [vmem:[#allocation4] sm:$0xff]
      %107 = vadd.xlane.f32.xlu0 %v106
      %v108 = vpop.xlane.xlu0 %107
      %v109 = vrot.slane %v108, 4
      %v110 = vadd.f32 %v108, %v109
      %v111 = vrot.slane %v110, 2
      %v112 = vadd.f32 %v110, %v111
      %v113 = vrot.slane %v112, 1
      %v114 = vadd.f32 %v112, %v113
      %s115 = vtos %v114
      %v116 = vld [vmem:[#allocation5] sm:$0xff]
      %117 = vadd.xlane.f32.xlu0 %v116
      %v118 = vpop.xlane.xlu0 %117
      %v119 = vrot.slane %v118, 4
      %v120 = vadd.f32 %v118, %v119
      %v121 = vrot.slane %v120, 2
      %v122 = vadd.f32 %v120, %v121
      %v123 = vrot.slane %v122, 1
      %v124 = vadd.f32 %v122, %v123
      %s125 = vtos %v124
      %v126 = vld [vmem:[#allocation6] sm:$0xff]
      %127 = vadd.xlane.f32.xlu0 %v126
      %v128 = vpop.xlane.xlu0 %127
      %v129 = vrot.slane %v128, 4
      %v130 = vadd.f32 %v128, %v129
      %v131 = vrot.slane %v130, 2
      %v132 = vadd.f32 %v130, %v131
      %v133 = vrot.slane %v132, 1
      %v134 = vadd.f32 %v132, %v133
      %s135 = vtos %v134
      %v136 = vrcp.pop 2048.0
      %v137 = vmul.f32 2048.0, %v136
      %v138 = vsub.f32 1.0, %v137
      %v139 = vmul.f32 %v136, %v138
      %v140 = vadd.f32 %v136, %v139
      %vm141 = vweird.f32 %v136
      %v142 = vsel %vm141, %v136, %v140
      %s143 = vtos %v142
      %s144 = smul.f32 %s95, %s143
      %v145 = vrcp.pop 2048.0
      %v146 = vmul.f32 2048.0, %v145
      %v147 = vsub.f32 1.0, %v146
      %v148 = vmul.f32 %v145, %v147
      %v149 = vadd.f32 %v145, %v148
      %vm150 = vweird.f32 %v145
      %v151 = vsel %vm150, %v145, %v149
      %s152 = vtos %v151
      %s153 = smul.f32 %s105, %s152
      %s154 = smul.f32 %s144, 2048.0
      %s155 = smul.f32 %s154, %s153
      %s156 = ssub.f32 %s115, %s155
      %s157 = smul.f32 %s154, %s144
      %s158 = ssub.f32 %s125, %s157
      %s159 = smul.f32 %s153, 2048.0
      %s160 = smul.f32 %s159, %s153
      %s161 = ssub.f32 %s135, %s160
      %s162 = smul.f32 %s158, %s161
      %v163 = vstv %s162
      %v164 = vrsqrt.pop %v163
      %v165 = vmul.f32 %v164, %v163
      %v166 = vmul.f32 %v165, %v164
      %v167 = vmul.f32 0.5, %v166
      %v168 = vsub.f32 1.5, %v167
      %v169 = vmul.f32 %v164, %v168
      %v170 = vmul.f32 %v163, %v169
      %vm171 = vcmp.eq.f32.partialorder %v163, inf
      %v172 = vsel %vm171, %v163, %v170
      %vm173 = vcmp.eq.f32.partialorder %v163, 0.0
      %v174 = vand.u32 %v163, 2147483648
      %v175 = vsel %vm173, %v174, %v172
      %s176 = vtos %v175
      %v177 = vstv %s176
      %v178 = vrcp.pop %v177
      %v179 = vmul.f32 %v177, %v178
      %v180 = vsub.f32 1.0, %v179
      %v181 = vmul.f32 %v178, %v180
      %v182 = vadd.f32 %v178, %v181
      %vm183 = vweird.f32 %v177
      %vm184 = vweird.f32 %v178
      %vm185 = vmor %vm183, %vm184
      %v186 = vsel %vm185, %v178, %v182
      %v187 = vand.u32 2147483647, %v177
      %vm188 = vcmp.eq.f32.partialorder %v187, 8.507059e+37
      %v189 = vand.u32 %v177, 2147483648
      %v190 = vor.u32 1.1754944e-38, %v189
      %v191 = vsel %vm188, %v190, %v186
      %s192 = vtos %v191
      %s193 = smul.f32 %s156, %s192
      %s194 = ssub.f32 1.0, %s193
      %s195 = scalar_lea.smem [#allocation12], 0
      %196 = sst [smem:[%s195]] %s194
    $region25: #{tpu_custom_call.1} parent=1 // pred_fallthru
      _
    // Predicated region
    $region26: #{tpu_custom_call.1} parent=1 // pred_check
      _
    $region27: #{tpu_custom_call.1} parent=1 // pred_check_branch
      %198 = sbr.rel (0) target = $region29
    $region28: #{tpu_custom_call.1} parent=1 // pred_region
      %200 = vsyncadd [#allocation9], 0
      %s202 = sshll.u32 %s2, 4
      %s203 = int_to_ptr.hbm [resolvable:$true] %s202
      %205 = dma.smem_to_hbm [#allocation12], 16, %s203, [#allocation9]
    $region29: #{tpu_custom_call.1} parent=1 // pred_fallthru
      _
    // Predicated region
    $region30: #{tpu_custom_call.1} parent=1 // pred_check
      _
    $region31: #{tpu_custom_call.1} parent=1 // pred_check_branch
      %207 = sbr.rel (0) target = $region33
    $region32: #{tpu_custom_call.1} parent=1 // pred_region
      %209 = dma.done [#allocation9], 16
    $region33: #{tpu_custom_call.1} parent=1 // pred_fallthru
      _
    %210 = sfence
    %211 = vsyncpa [#allocation8], 1
    %212 = vsyncpa [#allocation11], 1
    %213 = vsyncpa [#allocation9], 1

</llo_original>
